<compile_context>
chip_gen: v7x
topology: tpu7x:2x2x1
jax: 0.10.0
libtpu: 0.0.40
codegen_flags: <defaults>
</compile_context>

<pallas_src>
import jax
import jax.numpy as jnp
from jax.experimental import pallas as pl
from jax.experimental.pallas import tpu as pltpu

IN_FEATURES = 128
NUM_CLASSES = 3


def _round_up(x, m):
    return ((x + m - 1) // m) * m


def _linear_kernel(x_ref, w_ref, b_ref, o_ref):
    # x_ref: [TB, 128], w_ref: [128, C], b_ref: [1, C], o_ref: [TB, C]
    acc = jnp.dot(x_ref[...], w_ref[...], preferred_element_type=jnp.float32)
    o_ref[...] = (acc + b_ref[...]).astype(o_ref.dtype)


def linear_classifier(features, weight_t, bias, *, block_rows=4096):
    """features: [..., 128] f32, weight_t: [128, C] f32, bias: [1, C] f32."""
    orig_shape = features.shape
    K = orig_shape[-1]
    K2, C = weight_t.shape
    assert K == K2 == IN_FEATURES

    # nn.Linear accepts arbitrary leading dims; flatten them to one batch dim.
    x = features.reshape(-1, K)
    B = x.shape[0]

    # Batch tile: multiple of 8 (sublane), capped at block_rows, and no larger
    # than the (rounded-up) batch so small batches don't over-allocate.
    tb = min(block_rows, _round_up(B, 8))
    grid = (pl.cdiv(B, tb),)

    cost = pl.CostEstimate(
        flops=2 * B * K * C,
        bytes_accessed=B * K * 4 + K * C * 4 + B * C * 4 + C * 4,
        transcendentals=0,
    )

    out = pl.pallas_call(
        _linear_kernel,
        out_shape=jax.ShapeDtypeStruct((B, C), x.dtype),
        grid_spec=pltpu.PrefetchScalarGridSpec(
            num_scalar_prefetch=0,
            grid=grid,
            in_specs=[
                # Stream batch tiles of the activations (double-buffered DMA).
                pl.BlockSpec((tb, K), lambda i: (i, 0)),
                # Weight and bias stay resident in VMEM across all grid steps.
                pl.BlockSpec((K, C), lambda i: (0, 0)),
                pl.BlockSpec((1, C), lambda i: (0, 0)),
            ],
            out_specs=pl.BlockSpec((tb, C), lambda i: (i, 0)),
        ),
        compiler_params=pltpu.CompilerParams(
            dimension_semantics=("parallel",)),
        cost_estimate=cost,
    )(x, weight_t, bias)

    return out.reshape(orig_shape[:-1] + (C,))


def init_params(key, in_features=IN_FEATURES, num_classes=NUM_CLASSES):
    # Deterministic init mimicking nn.Linear's uniform(-1/sqrt(fan_in), +).
    kw, kb = jax.random.split(key)
    bound = 1.0 / jnp.sqrt(float(in_features))
    # PyTorch stores weight as [out, in]; we keep the transposed [in, out].
    weight_t = jax.random.uniform(
        kw, (in_features, num_classes), jnp.float32, -bound, bound)
    bias = jax.random.uniform(
        kb, (1, num_classes), jnp.float32, -bound, bound)
    return weight_t, bias


if __name__ == "__main__":
    key = jax.random.PRNGKey(0)
    k_x, k_x2, k_p = jax.random.split(key, 3)

    weight_t, bias = init_params(k_p)

    # Small batch (module-sized example): B=2.
    B = 2
    features = jax.random.normal(k_x, (B, IN_FEATURES), jnp.float32)
    out = linear_classifier(features, weight_t, bias)
    out = jax.block_until_ready(out)
    ref = features @ weight_t + bias
    assert out.shape == (B, NUM_CLASSES)
    assert jnp.allclose(out, ref, atol=1e-5, rtol=1e-5)

    # Larger batch exercising multiple grid steps + a partial last tile.
    B2 = 520
    features2 = jax.random.normal(k_x2, (B2, IN_FEATURES), jnp.float32)
    out2 = linear_classifier(features2, weight_t, bias, block_rows=256)
    out2 = jax.block_until_ready(out2)
    ref2 = features2 @ weight_t + bias
    assert out2.shape == (B2, NUM_CLASSES)
    assert jnp.allclose(out2, ref2, atol=1e-5, rtol=1e-5)

    print("KERNEL_OK")
</pallas_src>

<mosaic_0001>
module attributes {stable_mosaic.version = 11 : i64} {
  func.func @_linear_kernel(%arg0: i32, %arg1: memref<8x128xf32, #tpu.memory_space<vmem>>, %arg2: memref<128x3xf32, #tpu.memory_space<vmem>>, %arg3: memref<1x3xf32, #tpu.memory_space<vmem>>, %arg4: memref<8x3xf32, #tpu.memory_space<vmem>>) attributes {dimension_semantics = [#tpu.dimension_semantics<parallel>], iteration_bounds = array<i64: 1>, scalar_prefetch = 0 : i64, scratch_operands = 0 : i64, tpu.core_type = #tpu.core_type<tc>, window_params = [{transform_indices = @transform_0, window_bounds = array<i64: 8, 128>}, {pipeline_mode = #tpu.pipeline_mode<synchronous>, transform_indices = @transform_1, window_bounds = array<i64: 128, 3>}, {pipeline_mode = #tpu.pipeline_mode<synchronous>, transform_indices = @transform_2, window_bounds = array<i64: 1, 3>}, {transform_indices = @transform_3, window_bounds = array<i64: 8, 3>}]} {
    %c0 = arith.constant 0 : index
    %c0_0 = arith.constant 0 : index
    %0 = vector.load %arg1[%c0, %c0_0] : memref<8x128xf32, #tpu.memory_space<vmem>>, vector<8x128xf32>
    %c0_1 = arith.constant 0 : index
    %c0_2 = arith.constant 0 : index
    %1 = vector.load %arg2[%c0_1, %c0_2] : memref<128x3xf32, #tpu.memory_space<vmem>>, vector<128x3xf32>
    %cst = arith.constant dense<0.000000e+00> : vector<8x3xf32>
    %2 = tpu.matmul %0, %1, %cst {dimension_numbers = #tpu.dot_dimension_numbers<[1], [0], [0], [1], [0, 0, 1, 1], [], []>} : vector<8x128xf32>, vector<128x3xf32>, vector<8x3xf32> -> vector<8x3xf32>
    %c0_3 = arith.constant 0 : index
    %c0_4 = arith.constant 0 : index
    %3 = vector.load %arg3[%c0_3, %c0_4] : memref<1x3xf32, #tpu.memory_space<vmem>>, vector<1x3xf32>
    %4 = vector.broadcast %3 : vector<1x3xf32> to vector<8x3xf32>
    %5 = arith.addf %2, %4 : vector<8x3xf32>
    %c0_5 = arith.constant 0 : index
    %c0_6 = arith.constant 0 : index
    %6 = vector.load %arg4[%c0_5, %c0_6] : memref<8x3xf32, #tpu.memory_space<vmem>>, vector<8x3xf32>
    tpu.vector_store %arg4[%c0_5, %c0_6], %5 {strides = array<i32>} : memref<8x3xf32, #tpu.memory_space<vmem>>, vector<8x3xf32>,
    return
  }
  func.func @transform_0(%arg0: i32) -> (i32, i32) {
    %c0_i32 = arith.constant 0 : i32
    %c0_i32_0 = arith.constant 0 : i32
    return %arg0, %c0_i32 : i32, i32
  }
  func.func @transform_1(%arg0: i32) -> (i32, i32) {
    %c0_i32 = arith.constant 0 : i32
    %c0_i32_0 = arith.constant 0 : i32
    %c0_i32_1 = arith.constant 0 : i32
    return %c0_i32, %c0_i32_0 : i32, i32
  }
  func.func @transform_2(%arg0: i32) -> (i32, i32) {
    %c0_i32 = arith.constant 0 : i32
    %c0_i32_0 = arith.constant 0 : i32
    %c0_i32_1 = arith.constant 0 : i32
    return %c0_i32, %c0_i32_0 : i32, i32
  }
  func.func @transform_3(%arg0: i32) -> (i32, i32) {
    %c0_i32 = arith.constant 0 : i32
    %c0_i32_0 = arith.constant 0 : i32
    return %arg0, %c0_i32 : i32, i32
  }
}

</mosaic_0001>

<llo_original>
// kernel: tpu_custom_call.1
$region0: #{tpu_custom_call.1}
  #allocation0 [shape = 'u32[]', space=smem, size = 0x4, offset = 0x4, fixed_abs, tag = 'smem constant byte address 0x4 - core index']
  #allocation1 [shape = 'u32[144,128]{1,0:T(1,128)}', space=vmem, size = 0x12000, scoped, tag = 'internal scratch']
  %s0 = inlined_call_operand.vmem [shape: f32[2,128], index: 0, kind: input, shape index: {}]
  %s1 = inlined_call_operand.vmem [shape: f32[128,3], index: 1, kind: input, shape index: {}]
  %s2 = inlined_call_operand.vmem [shape: f32[1,3], index: 2, kind: input, shape index: {}]
  %s3 = inlined_call_operand.hbm [shape: f32[2,3], index: 3, kind: output, shape index: {}]
  %s4 = sld [smem:[#allocation0]]
  $region22: #{tpu_custom_call.1} parent=0
    _
  %s6 = ssub.s32 1, %s4
  %s7 = scalar_select 0, %s6, %s4
  $region1: #{tpu_custom_call.1} parent=0
    #allocation2 [shape = 'u8[4096]{0}', space=vmem, size = 0x1000, scoped, tag = 'output window, operand 0, single buffered']
    #allocation3 [shape = 's32[1]{0}', space=sflag, size = 0x4, scoped, tag = 'scoped memory for tpu_custom_call.1']
    %8 = vsyncpa [#allocation3], 0
    // Predicated region
    $region2: #{tpu_custom_call.1} parent=1 // pred_check
      _
    $region3: #{tpu_custom_call.1} parent=1 // pred_check_branch
      %10 = sbr.rel (0) target = $region5
    $region4: #{tpu_custom_call.1} parent=1 // pred_region
      _
    $region5: #{tpu_custom_call.1} parent=1 // pred_fallthru
      _
    // Predicated region
    $region6: #{tpu_custom_call.1} parent=1 // pred_check
      _
    $region7: #{tpu_custom_call.1} parent=1 // pred_check_branch
      %12 = sbr.rel (0) target = $region9
    $region8: #{tpu_custom_call.1} parent=1 // pred_region
      _
    $region9: #{tpu_custom_call.1} parent=1 // pred_fallthru
      _
    // Predicated region
    $region10: #{tpu_custom_call.1} parent=1 // pred_check
      _
    $region11: #{tpu_custom_call.1} parent=1 // pred_check_branch
      %14 = sbr.rel (0) target = $region13
    $region12: #{tpu_custom_call.1} parent=1 // pred_region
      _
    $region13: #{tpu_custom_call.1} parent=1 // pred_fallthru
      _
    %v15 = vld [vmem:[%s0] sm:$0xff]
    %v16 = vld [vmem:[%s1] sm:$0xff]
    %v17 = vld [vmem:[%s1 + $0x8] sm:$0xff]
    %v18 = vld [vmem:[%s1 + $0x10] sm:$0xff]
    %v19 = vld [vmem:[%s1 + $0x18] sm:$0xff]
    %v20 = vld [vmem:[%s1 + $0x20] sm:$0xff]
    %v21 = vld [vmem:[%s1 + $0x28] sm:$0xff]
    %v22 = vld [vmem:[%s1 + $0x30] sm:$0xff]
    %v23 = vld [vmem:[%s1 + $0x38] sm:$0xff]
    %v24 = vld [vmem:[%s1 + $0x40] sm:$0xff]
    %v25 = vld [vmem:[%s1 + $0x48] sm:$0xff]
    %v26 = vld [vmem:[%s1 + $0x50] sm:$0xff]
    %v27 = vld [vmem:[%s1 + $0x58] sm:$0xff]
    %v28 = vld [vmem:[%s1 + $0x60] sm:$0xff]
    %v29 = vld [vmem:[%s1 + $0x68] sm:$0xff]
    %v30 = vld [vmem:[%s1 + $0x70] sm:$0xff]
    %v31 = vld [vmem:[%s1 + $0x78] sm:$0xff]
    %v32 = vld [vmem:[%s2] sm:$0x1]
    %v34 = vlaneseq
    %v35 = vshrl.u32 %v34, 7
    %v36 = vsub.s32 0, %v35
    %v37 = vrot.slane %v32, %v36
    %39 = vmatprep.subr.mxu0 0.0
    %40 = vmatpush1.msra.mxu0 %v16
    %41 = vmatprep.subr.mxu0 0.0
    %42 = vmatpush1.msra.mxu0 %v17
    %43 = vmatprep.subr.mxu0 0.0
    %44 = vmatpush1.msra.mxu0 %v18
    %45 = vmatprep.subr.mxu0 0.0
    %46 = vmatpush1.msra.mxu0 %v19
    %47 = vmatprep.subr.mxu0 0.0
    %48 = vmatpush1.msra.mxu0 %v20
    %49 = vmatprep.subr.mxu0 0.0
    %50 = vmatpush1.msra.mxu0 %v21
    %51 = vmatprep.subr.mxu0 0.0
    %52 = vmatpush1.msra.mxu0 %v22
    %53 = vmatprep.subr.mxu0 0.0
    %54 = vmatpush1.msra.mxu0 %v23
    %55 = vmatprep.subr.mxu0 0.0
    %56 = vmatpush1.msra.mxu0 %v24
    %57 = vmatprep.subr.mxu0 0.0
    %58 = vmatpush1.msra.mxu0 %v25
    %59 = vmatprep.subr.mxu0 0.0
    %60 = vmatpush1.msra.mxu0 %v26
    %61 = vmatprep.subr.mxu0 0.0
    %62 = vmatpush1.msra.mxu0 %v27
    %63 = vmatprep.subr.mxu0 0.0
    %64 = vmatpush1.msra.mxu0 %v28
    %65 = vmatprep.subr.mxu0 0.0
    %66 = vmatpush1.msra.mxu0 %v29
    %67 = vmatprep.subr.mxu0 0.0
    %68 = vmatpush1.msra.mxu0 %v30
    %69 = vmatprep.subr.mxu0 0.0
    %70 = vmatpush1.msra.mxu0 %v31
    %71 = vmatprep.subr.mxu0 0.0
    %72 = vmatpush1.msra.mxu0 0.0
    %73 = vmatprep.subr.mxu0 0.0
    %74 = vmatpush1.msra.mxu0 0.0
    %75 = vmatprep.subr.mxu0 0.0
    %76 = vmatpush1.msra.mxu0 0.0
    %77 = vmatprep.subr.mxu0 0.0
    %78 = vmatpush1.msra.mxu0 0.0
    %79 = vmatprep.subr.mxu0 0.0
    %80 = vmatpush1.msra.mxu0 0.0
    %81 = vmatprep.subr.mxu0 0.0
    %82 = vmatpush1.msra.mxu0 0.0
    %83 = vmatprep.subr.mxu0 0.0
    %84 = vmatpush1.msra.mxu0 0.0
    %85 = vmatprep.subr.mxu0 0.0
    %86 = vmatpush1.msra.mxu0 0.0
    %87 = vmatprep.subr.mxu0 0.0
    %88 = vmatpush1.msra.mxu0 0.0
    %89 = vmatprep.subr.mxu0 0.0
    %90 = vmatpush1.msra.mxu0 0.0
    %91 = vmatprep.subr.mxu0 0.0
    %92 = vmatpush1.msra.mxu0 0.0
    %93 = vmatprep.subr.mxu0 0.0
    %94 = vmatpush1.msra.mxu0 0.0
    %95 = vmatprep.subr.mxu0 0.0
    %96 = vmatpush1.msra.mxu0 0.0
    %97 = vmatprep.subr.mxu0 0.0
    %98 = vmatpush1.msra.mxu0 0.0
    %99 = vmatprep.subr.mxu0 0.0
    %100 = vmatpush1.msra.mxu0 0.0
    %101 = vmatprep.subr.mxu0 0.0
    %102 = vmatpush1.msra.mxu0 0.0
    %103 = vmatprep.mubr.f32.mxu0 0.0
    %104 = vmatmul.mubr.f32.gmra.mrb[0].mxu0 %v15
    %v105 = vpop.f32.mrb[0].mxu0
    %v106 = vadd.f32 %v37, %v105
    %v107 = vpop.f32.mrb[0].mxu0
    %108 = vdwg.mxu0
    %vm109 = vcmask 23552
    %110 = vst.msk [vmem:[#allocation2] sm:$0xff] %vm109, %v106
    // Predicated region
    $region14: #{tpu_custom_call.1} parent=1 // pred_check
      _
    $region15: #{tpu_custom_call.1} parent=1 // pred_check_branch
      %112 = sbr.rel (0) target = $region17
    $region16: #{tpu_custom_call.1} parent=1 // pred_region
      %s114 = ssub.s32 128, 32
      %115 = vsyncadd [#allocation3], %s114
      %s116 = sshll.u32 [#allocation2], 4
      %s117 = int_to_ptr.vmem [resolvable:$true] %s116
      %122 = dma.vmem_to_hbm [thread:$0]  %s117, 32, %s3, [#allocation3], 32, 32, 2
    $region17: #{tpu_custom_call.1} parent=1 // pred_fallthru
      _
    // Predicated region
    $region18: #{tpu_custom_call.1} parent=1 // pred_check
      _
    $region19: #{tpu_custom_call.1} parent=1 // pred_check_branch
      %124 = sbr.rel (0) target = $region21
    $region20: #{tpu_custom_call.1} parent=1 // pred_region
      %125 = dma.done [#allocation3], 128
    $region21: #{tpu_custom_call.1} parent=1 // pred_fallthru
      _
    %126 = vsyncpa [#allocation3], 1

</llo_original>
